<compile_context>
chip_gen: v7x
topology: tpu7x:2x2x1
jax: 0.10.0
libtpu: 0.0.40
codegen_flags: <defaults>
</compile_context>

<pallas_src>
import functools

import jax
import jax.numpy as jnp
import numpy as np
from jax import lax
from jax.experimental import pallas as pl
from jax.experimental.pallas import tpu as pltpu

EPS = 1e-5


# ------------------------------- small helpers ------------------------------ #

def _round_up(x, m):
    return (x + m - 1) // m * m


def _pick_row_tile(m):
    # row tile for the 1x1-conv matmul: multiple of 8, capped at 512
    return min(512, _round_up(m, 8))


def _pick_spatial_tile(hw):
    # per-batch spatial tile for the fused epilogue: divides HW, multiple of 8 if possible
    if hw <= 512:
        return hw
    for ts in range(512, 7, -8):
        if hw % ts == 0:
            return ts
    return hw


def bn_fold(gamma, beta, mean, var):
    scale = gamma / jnp.sqrt(var + EPS)
    return scale, beta - mean * scale


# ------------------------------- Pallas kernels ----------------------------- #

def _conv1_kernel(x_ref, w_ref, s_ref, b_ref, o_ref, *, cdt):
    # (tm, Cin) @ (Cin, Cout) + folded BN + ReLU
    acc = jnp.dot(x_ref[...].astype(cdt), w_ref[...], preferred_element_type=jnp.float32)
    y = acc * s_ref[...] + b_ref[...]
    o_ref[...] = jnp.maximum(y, 0.0).astype(o_ref.dtype)


def _branches_gap_kernel(yp_ref, w0_ref, w1_ref, s0_ref, c0_ref, s1_ref, c1_ref,
                         b0_ref, b1_ref, gap_ref, acc_ref, *, H, W, pad):
    # yp_ref: (1, H+2*pad, W+2*pad, C) shared padded input for one batch element.
    # For each branch (dilation d = 1, 2): 9 shifted matmuls accumulated into the
    # VMEM scratch acc_ref, then folded BN + ReLU.  Also emits GAP(b0 + b1).
    # TODO(synk): each tap slice crosses (8,128) tiles -> relayout copies; a
    #             pltpu.roll / aligned-row-tile variant would make this MXU-bound.
    HW = H * W
    C = b0_ref.shape[-1]
    w_refs = (w0_ref, w1_ref)
    s_refs = (s0_ref, s1_ref)
    c_refs = (c0_ref, c1_ref)
    out_refs = (b0_ref, b1_ref)

    gap_acc = jnp.zeros((1, C), jnp.float32)
    for i in range(2):
        d = i + 1
        acc_ref[...] = jnp.zeros_like(acc_ref)
        for kh in range(3):
            for kw in range(3):
                oh = pad - d + kh * d
                ow = pad - d + kw * d
                patch = yp_ref[0, oh:oh + H, ow:ow + W, :].reshape(HW, C)
                acc_ref[...] += jnp.dot(patch, w_refs[i][kh * 3 + kw],
                                        preferred_element_type=jnp.float32)
        z = jnp.maximum(acc_ref[...] * s_refs[i][...] + c_refs[i][...], 0.0)
        zs = z.astype(out_refs[i].dtype)              # stored in compute dtype
        out_refs[i][0] = zs
        gap_acc = gap_acc + jnp.sum(zs.astype(jnp.float32), axis=0, keepdims=True)
    gap_ref[0] = (gap_acc * (1.0 / HW)).astype(gap_ref.dtype)


def _attention_kernel(gap_ref, fcw_ref, fcs_ref, fcc_ref, f0w_ref, f0b_ref,
                      f1w_ref, f1b_ref, a0_ref, a1_ref, *, approx):
    # Batched SK attention: (N, C) GAP -> fc + BN + ReLU -> two fcs heads -> softmax
    # over the 2 branches.  All math in f32 (tiny matmuls).
    gap = gap_ref[...].astype(jnp.float32)                              # (N, C)
    z = jnp.dot(gap, fcw_ref[...], preferred_element_type=jnp.float32)  # (N, L)
    z = jnp.maximum(z * fcs_ref[...] + fcc_ref[...], 0.0)
    l0 = jnp.dot(z, f0w_ref[...], preferred_element_type=jnp.float32) + f0b_ref[...]
    l1 = jnp.dot(z, f1w_ref[...], preferred_element_type=jnp.float32) + f1b_ref[...]
    m = jnp.maximum(l0, l1)
    e0 = jnp.exp(l0 - m)
    e1 = jnp.exp(l1 - m)
    inv = pl.reciprocal(e0 + e1, approx=approx)
    a0_ref[...] = (e0 * inv).astype(a0_ref.dtype)
    a1_ref[...] = (e1 * inv).astype(a1_ref.dtype)


def _epilogue_id_kernel(b0_ref, b1_ref, a0_ref, a1_ref, x_ref, w3_ref, s3_ref, c3_ref,
                        o_ref, *, cdt):
    # weighted combine + conv3 (1x1) + BN + identity residual + ReLU
    comb = (b0_ref[0].astype(jnp.float32) * a0_ref[0]
            + b1_ref[0].astype(jnp.float32) * a1_ref[0])                # (ts, Cmid)
    y = jnp.dot(comb.astype(cdt), w3_ref[...], preferred_element_type=jnp.float32)
    y = y * s3_ref[...] + c3_ref[...] + x_ref[0].astype(jnp.float32)
    o_ref[0] = jnp.maximum(y, 0.0).astype(o_ref.dtype)


def _epilogue_sc_kernel(b0_ref, b1_ref, a0_ref, a1_ref, x_ref, w3_ref, s3_ref, c3_ref,
                        wsc_ref, ssc_ref, csc_ref, o_ref, *, cdt):
    # weighted combine + conv3 (1x1) + BN + fused 1x1-conv+BN shortcut + ReLU
    comb = (b0_ref[0].astype(jnp.float32) * a0_ref[0]
            + b1_ref[0].astype(jnp.float32) * a1_ref[0])
    y = jnp.dot(comb.astype(cdt), w3_ref[...], preferred_element_type=jnp.float32)
    y = y * s3_ref[...] + c3_ref[...]
    r = jnp.dot(x_ref[0].astype(cdt), wsc_ref[...], preferred_element_type=jnp.float32)
    y = y + r * ssc_ref[...] + csc_ref[...]
    o_ref[0] = jnp.maximum(y, 0.0).astype(o_ref.dtype)


# ------------------------------ kernel wrappers ------------------------------ #

def conv1x1_bn_relu(x2d, w, scale, bias, *, cdt, out_dtype):
    M, Cin = x2d.shape
    Cout = w.shape[1]
    tm = _pick_row_tile(M)
    Mp = _round_up(M, tm)
    if Mp != M:
        x2d = jnp.pad(x2d, ((0, Mp - M), (0, 0)))
    kern = functools.partial(_conv1_kernel, cdt=cdt)
    y = pl.pallas_call(
        kern,
        out_shape=jax.ShapeDtypeStruct((Mp, Cout), out_dtype),
        grid=(Mp // tm,),
        in_specs=[
            pl.BlockSpec((tm, Cin), lambda i: (i, 0)),
            pl.BlockSpec((Cin, Cout), lambda i: (0, 0)),
            pl.BlockSpec((1, Cout), lambda i: (0, 0)),
            pl.BlockSpec((1, Cout), lambda i: (0, 0)),
        ],
        out_specs=pl.BlockSpec((tm, Cout), lambda i: (i, 0)),
        compiler_params=pltpu.CompilerParams(dimension_semantics=("parallel",)),
    )(x2d, w, scale.reshape(1, -1), bias.reshape(1, -1))
    return y[:M] if Mp != M else y


def branches_and_gap(yp, w0, w1, s0, c0, s1, c1, *, H, W, pad, act_dtype):
    N, Hp, Wp, C = yp.shape
    HW = H * W
    kern = functools.partial(_branches_gap_kernel, H=H, W=W, pad=pad)
    wspec = pl.BlockSpec((9, C, C), lambda n: (0, 0, 0))
    vspec = pl.BlockSpec((1, C), lambda n: (0, 0))
    return pl.pallas_call(
        kern,
        out_shape=(jax.ShapeDtypeStruct((N, HW, C), act_dtype),
                   jax.ShapeDtypeStruct((N, HW, C), act_dtype),
                   jax.ShapeDtypeStruct((N, 1, C), jnp.float32)),
        grid=(N,),
        in_specs=[
            pl.BlockSpec((1, Hp, Wp, C), lambda n: (n, 0, 0, 0)),
            wspec, wspec, vspec, vspec, vspec, vspec,
        ],
        out_specs=(pl.BlockSpec((1, HW, C), lambda n: (n, 0, 0)),
                   pl.BlockSpec((1, HW, C), lambda n: (n, 0, 0)),
                   pl.BlockSpec((1, 1, C), lambda n: (n, 0, 0))),
        scratch_shapes=[pltpu.VMEM((HW, C), jnp.float32)],
        compiler_params=pltpu.CompilerParams(dimension_semantics=("parallel",)),
    )(yp, w0, w1, s0.reshape(1, -1), c0.reshape(1, -1),
      s1.reshape(1, -1), c1.reshape(1, -1))


def sk_attention(gap2d, fc_w, fc_s, fc_c, f0_w, f0_b, f1_w, f1_b, *, approx):
    N, C = gap2d.shape
    kern = functools.partial(_attention_kernel, approx=approx)
    return pl.pallas_call(
        kern,
        out_shape=(jax.ShapeDtypeStruct((N, C), jnp.float32),
                   jax.ShapeDtypeStruct((N, C), jnp.float32)),
    )(gap2d, fc_w.astype(jnp.float32), fc_s.reshape(1, -1), fc_c.reshape(1, -1),
      f0_w.astype(jnp.float32), f0_b.reshape(1, -1),
      f1_w.astype(jnp.float32), f1_b.reshape(1, -1))


def sk_epilogue(b0, b1, a0, a1, x3d, w3, s3, c3, wsc=None, ssc=None, csc=None, *, cdt):
    N, HW, C = b0.shape
    Cin = x3d.shape[-1]
    Cout = w3.shape[1]
    ts = _pick_spatial_tile(HW)
    grid = (N, HW // ts)
    row3 = lambda n, s: (n, s, 0)
    bcast3 = lambda n, s: (n, 0, 0)
    full2 = lambda n, s: (0, 0)

    in_specs = [
        pl.BlockSpec((1, ts, C), row3),          # b0
        pl.BlockSpec((1, ts, C), row3),          # b1
        pl.BlockSpec((1, 1, C), bcast3),         # attention weight, branch 0
        pl.BlockSpec((1, 1, C), bcast3),         # attention weight, branch 1
        pl.BlockSpec((1, ts, Cin), row3),        # residual / shortcut input
        pl.BlockSpec((C, Cout), full2),          # w3
        pl.BlockSpec((1, Cout), full2),          # bn3 scale
        pl.BlockSpec((1, Cout), full2),          # bn3 bias
    ]
    args = [b0, b1, a0, a1, x3d, w3, s3.reshape(1, -1), c3.reshape(1, -1)]
    if wsc is None:
        kern = functools.partial(_epilogue_id_kernel, cdt=cdt)
    else:
        kern = functools.partial(_epilogue_sc_kernel, cdt=cdt)
        in_specs += [pl.BlockSpec((Cin, Cout), full2),
                     pl.BlockSpec((1, Cout), full2),
                     pl.BlockSpec((1, Cout), full2)]
        args += [wsc, ssc.reshape(1, -1), csc.reshape(1, -1)]

    return pl.pallas_call(
        kern,
        out_shape=jax.ShapeDtypeStruct((N, HW, Cout), jnp.float32),
        grid=grid,
        in_specs=in_specs,
        out_specs=pl.BlockSpec((1, ts, Cout), row3),
        compiler_params=pltpu.CompilerParams(dimension_semantics=("parallel", "parallel")),
    )(*args)


# ------------------------------ params & forward ----------------------------- #

def init_params(key, in_ch, mid_ch, out_ch, *, branches=2, group=32, reduce=16, length=32):
    assert mid_ch % group == 0
    L = max(mid_ch // reduce, length)
    Cg = mid_ch // group
    keys = jax.random.split(key, 64)
    it = iter(keys)

    def bn_params(c):
        return dict(gamma=jax.random.uniform(next(it), (c,), minval=0.5, maxval=1.5),
                    beta=0.1 * jax.random.normal(next(it), (c,)),
                    mean=0.1 * jax.random.normal(next(it), (c,)),
                    var=jax.random.uniform(next(it), (c,), minval=0.5, maxval=1.5))

    p = {}
    p['w1'] = 0.1 * jax.random.normal(next(it), (in_ch, mid_ch))
    p['bn1'] = bn_params(mid_ch)
    p['wb'] = []
    p['bnb'] = []
    for _ in range(branches):
        wg = 0.1 * jax.random.normal(next(it), (group, 3, 3, Cg, Cg))
        dense = jnp.zeros((3, 3, mid_ch, mid_ch), jnp.float32)
        for g in range(group):
            dense = dense.at[:, :, g * Cg:(g + 1) * Cg, g * Cg:(g + 1) * Cg].set(wg[g])
        p['wb'].append(dense)                    # dense block-diagonal == grouped conv
        p['bnb'].append(bn_params(mid_ch))
    p['fc_w'] = 0.1 * jax.random.normal(next(it), (mid_ch, L))
    p['bn_fc'] = bn_params(L)
    p['fcs_w'] = [0.1 * jax.random.normal(next(it), (L, mid_ch)) for _ in range(branches)]
    p['fcs_b'] = [0.1 * jax.random.normal(next(it), (mid_ch,)) for _ in range(branches)]
    p['w3'] = 0.1 * jax.random.normal(next(it), (mid_ch, out_ch))
    p['bn3'] = bn_params(out_ch)
    if in_ch != out_ch:
        p['w_sc'] = 0.1 * jax.random.normal(next(it), (in_ch, out_ch))
        p['bn_sc'] = bn_params(out_ch)
    return p, L


def sk_unit_forward(x, p, compute_dtype=jnp.bfloat16):
    # x: (N, H, W, Cin).  compute_dtype: matmul input dtype (bf16 = MXU fast path).
    N, H, W, Cin = x.shape
    mid = p['w1'].shape[1]
    Cout = p['w3'].shape[1]
    HW = H * W
    cdt = compute_dtype
    PAD = 2   # max dilation; one shared padded buffer feeds both branches

    # conv1: 1x1 conv + BN + ReLU
    s1, c1 = bn_fold(**p['bn1'])
    y2d = conv1x1_bn_relu(x.reshape(N * HW, Cin), p['w1'].astype(cdt), s1, c1,
                          cdt=cdt, out_dtype=cdt)
    yp = jnp.pad(y2d.reshape(N, H, W, mid), ((0, 0), (PAD, PAD), (PAD, PAD), (0, 0)))

    # SKConv branches: both grouped dilated 3x3 convs + BN + ReLU + GAP in one kernel
    sb = [bn_fold(**p['bnb'][i]) for i in range(2)]
    wb = [p['wb'][i].reshape(9, mid, mid).astype(cdt) for i in range(2)]
    b0, b1, gap = branches_and_gap(yp, wb[0], wb[1], sb[0][0], sb[0][1],
                                   sb[1][0], sb[1][1], H=H, W=W, pad=PAD, act_dtype=cdt)

    # SK attention (batched over N)
    sfc, cfc = bn_fold(**p['bn_fc'])
    a0, a1 = sk_attention(gap.reshape(N, mid), p['fc_w'], sfc, cfc,
                          p['fcs_w'][0], p['fcs_b'][0], p['fcs_w'][1], p['fcs_b'][1],
                          approx=(cdt == jnp.bfloat16))

    # fused epilogue: combine + conv3 + BN + shortcut + residual add + ReLU
    s3, c3 = bn_fold(**p['bn3'])
    x3d = x.reshape(N, HW, Cin)
    a0 = a0.reshape(N, 1, mid)
    a1 = a1.reshape(N, 1, mid)
    if 'w_sc' in p:
        ssc, csc = bn_fold(**p['bn_sc'])
        out = sk_epilogue(b0, b1, a0, a1, x3d, p['w3'].astype(cdt), s3, c3,
                          p['w_sc'].astype(cdt), ssc, csc, cdt=cdt)
    else:
        out = sk_epilogue(b0, b1, a0, a1, x3d, p['w3'].astype(cdt), s3, c3, cdt=cdt)
    return out.reshape(N, H, W, Cout)


# ------------------------------ pure-JAX reference --------------------------- #

def ref_forward(x, p, compute_dtype=jnp.float32):
    # compute_dtype=float32 reproduces the exact PyTorch (f32) semantics.
    # compute_dtype=bfloat16 mirrors the kernel's mixed precision (bf16 matmul inputs,
    # f32 accumulation, bf16 activation storage) so the check stays tight.
    cdt = compute_dtype
    f32 = jnp.float32

    def bn(y, prm):
        return prm['gamma'] * (y - prm['mean']) / jnp.sqrt(prm['var'] + EPS) + prm['beta']

    def mm(a, b):
        return jnp.einsum('nhwc,cd->nhwd', a.astype(cdt), b.astype(cdt),
                          preferred_element_type=f32)

    def act(t):
        return t.astype(cdt).astype(f32)

    y = act(jnp.maximum(bn(mm(x, p['w1']), p['bn1']), 0.0))
    br = []
    for i in range(2):
        d = i + 1
        z = lax.conv_general_dilated(y.astype(cdt), p['wb'][i].astype(cdt), (1, 1),
                                     ((d, d), (d, d)), rhs_dilation=(d, d),
                                     dimension_numbers=('NHWC', 'HWIO', 'NHWC'),
                                     preferred_element_type=f32)
        br.append(act(jnp.maximum(bn(z, p['bnb'][i]), 0.0)))
    s = br[0] + br[1]
    gap = jnp.mean(s, axis=(1, 2))                                    # (N, C)
    z = jnp.maximum(bn(gap @ p['fc_w'], p['bn_fc']), 0.0)             # (N, L)
    a = jnp.stack([z @ p['fcs_w'][i] + p['fcs_b'][i] for i in range(2)], axis=1)
    att = jax.nn.softmax(a, axis=1)                                   # (N, 2, C)
    comb = br[0] * att[:, 0][:, None, None, :] + br[1] * att[:, 1][:, None, None, :]
    y3 = bn(mm(comb, p['w3']), p['bn3'])
    if 'w_sc' in p:
        res = bn(mm(x, p['w_sc']), p['bn_sc'])
    else:
        res = x
    return jnp.maximum(y3 + res, 0.0)


if __name__ == "__main__":
    key = jax.random.PRNGKey(0)
    kx, kp, kp2 = jax.random.split(key, 3)
    N, H, W = 2, 8, 8

    # --- Config A: in == out -> identity shortcut (module default situation) ---
    in_ch = mid_ch = out_ch = 128              # lane-dense channel widths
    x = jax.random.normal(kx, (N, H, W, in_ch), dtype=jnp.float32)
    params, _ = init_params(kp, in_ch, mid_ch, out_ch, branches=2, group=32,
                            reduce=16, length=32)

    # exact-precision path (f32 matmuls) vs pure f32 reference
    out_f32 = jax.block_until_ready(sk_unit_forward(x, params, compute_dtype=jnp.float32))
    ref_f32 = ref_forward(x, params, compute_dtype=jnp.float32)
    np.testing.assert_allclose(np.asarray(out_f32), np.asarray(ref_f32),
                               rtol=2e-4, atol=2e-4)

    # fast path (bf16 MXU inputs, f32 accumulation) vs matching-precision reference
    out_bf = jax.block_until_ready(sk_unit_forward(x, params, compute_dtype=jnp.bfloat16))
    ref_bf = ref_forward(x, params, compute_dtype=jnp.bfloat16)
    np.testing.assert_allclose(np.asarray(out_bf), np.asarray(ref_bf),
                               rtol=1e-2, atol=1e-2)

    # --- Config B: in != out -> fused 1x1-conv shortcut path ---
    in_b, mid_b, out_b = 64, 128, 128
    xb = jax.random.normal(kx, (N, H, W, in_b), dtype=jnp.float32)
    params_b, _ = init_params(kp2, in_b, mid_b, out_b, branches=2, group=32,
                              reduce=16, length=32)
    out_b_bf = jax.block_until_ready(sk_unit_forward(xb, params_b, compute_dtype=jnp.bfloat16))
    ref_b_bf = ref_forward(xb, params_b, compute_dtype=jnp.bfloat16)
    np.testing.assert_allclose(np.asarray(out_b_bf), np.asarray(ref_b_bf),
                               rtol=1e-2, atol=1e-2)

    print("KERNEL_OK")
</pallas_src>

<mosaic_0001>
module attributes {stable_mosaic.version = 11 : i64} {
  func.func @_conv1_kernel(%arg0: i32, %arg1: memref<128x128xf32, #tpu.memory_space<vmem>>, %arg2: memref<128x128xf32, #tpu.memory_space<vmem>>, %arg3: memref<1x128xf32, #tpu.memory_space<vmem>>, %arg4: memref<1x128xf32, #tpu.memory_space<vmem>>, %arg5: memref<128x128xf32, #tpu.memory_space<vmem>>) attributes {dimension_semantics = [#tpu.dimension_semantics<parallel>], iteration_bounds = array<i64: 1>, scalar_prefetch = 0 : i64, scratch_operands = 0 : i64, tpu.core_type = #tpu.core_type<tc>, window_params = [{transform_indices = @transform_0, window_bounds = array<i64: 128, 128>}, {pipeline_mode = #tpu.pipeline_mode<synchronous>, transform_indices = @transform_1, window_bounds = array<i64: 128, 128>}, {pipeline_mode = #tpu.pipeline_mode<synchronous>, transform_indices = @transform_2, window_bounds = array<i64: 1, 128>}, {pipeline_mode = #tpu.pipeline_mode<synchronous>, transform_indices = @transform_3, window_bounds = array<i64: 1, 128>}, {transform_indices = @transform_4, window_bounds = array<i64: 128, 128>}]} {
    %c0 = arith.constant 0 : index
    %c0_0 = arith.constant 0 : index
    %0 = vector.load %arg1[%c0, %c0_0] : memref<128x128xf32, #tpu.memory_space<vmem>>, vector<128x128xf32>
    %c0_1 = arith.constant 0 : index
    %c0_2 = arith.constant 0 : index
    %1 = vector.load %arg2[%c0_1, %c0_2] : memref<128x128xf32, #tpu.memory_space<vmem>>, vector<128x128xf32>
    %cst = arith.constant dense<0.000000e+00> : vector<128x128xf32>
    %2 = tpu.matmul %0, %1, %cst {dimension_numbers = #tpu.dot_dimension_numbers<[1], [0], [0], [1], [0, 0, 1, 1], [], []>} : vector<128x128xf32>, vector<128x128xf32>, vector<128x128xf32> -> vector<128x128xf32>
    %c0_3 = arith.constant 0 : index
    %c0_4 = arith.constant 0 : index
    %3 = vector.load %arg3[%c0_3, %c0_4] : memref<1x128xf32, #tpu.memory_space<vmem>>, vector<1x128xf32>
    %4 = vector.broadcast %3 : vector<1x128xf32> to vector<128x128xf32>
    %5 = arith.mulf %2, %4 : vector<128x128xf32>
    %c0_5 = arith.constant 0 : index
    %c0_6 = arith.constant 0 : index
    %6 = vector.load %arg4[%c0_5, %c0_6] : memref<1x128xf32, #tpu.memory_space<vmem>>, vector<1x128xf32>
    %7 = vector.broadcast %6 : vector<1x128xf32> to vector<128x128xf32>
    %8 = arith.addf %5, %7 : vector<128x128xf32>
    %cst_7 = arith.constant 0.000000e+00 : f32
    %9 = vector.broadcast %cst_7 : f32 to vector<128x128xf32>
    %10 = arith.maximumf %8, %9 : vector<128x128xf32>
    %c0_8 = arith.constant 0 : index
    %c0_9 = arith.constant 0 : index
    %11 = vector.load %arg5[%c0_8, %c0_9] : memref<128x128xf32, #tpu.memory_space<vmem>>, vector<128x128xf32>
    tpu.vector_store %arg5[%c0_8, %c0_9], %10 {strides = array<i32>} : memref<128x128xf32, #tpu.memory_space<vmem>>, vector<128x128xf32>,
    return
  }
  func.func @transform_0(%arg0: i32) -> (i32, i32) {
    %c0_i32 = arith.constant 0 : i32
    %c0_i32_0 = arith.constant 0 : i32
    return %arg0, %c0_i32 : i32, i32
  }
  func.func @transform_1(%arg0: i32) -> (i32, i32) {
    %c0_i32 = arith.constant 0 : i32
    %c0_i32_0 = arith.constant 0 : i32
    %c0_i32_1 = arith.constant 0 : i32
    return %c0_i32, %c0_i32_0 : i32, i32
  }
  func.func @transform_2(%arg0: i32) -> (i32, i32) {
    %c0_i32 = arith.constant 0 : i32
    %c0_i32_0 = arith.constant 0 : i32
    %c0_i32_1 = arith.constant 0 : i32
    return %c0_i32, %c0_i32_0 : i32, i32
  }
  func.func @transform_3(%arg0: i32) -> (i32, i32) {
    %c0_i32 = arith.constant 0 : i32
    %c0_i32_0 = arith.constant 0 : i32
    %c0_i32_1 = arith.constant 0 : i32
    return %c0_i32, %c0_i32_0 : i32, i32
  }
  func.func @transform_4(%arg0: i32) -> (i32, i32) {
    %c0_i32 = arith.constant 0 : i32
    %c0_i32_0 = arith.constant 0 : i32
    return %arg0, %c0_i32 : i32, i32
  }
}

</mosaic_0001>

<llo_original>
// kernel: tpu_custom_call.1
$region0: #{tpu_custom_call.1}
  #allocation0 [shape = 'u32[]', space=smem, size = 0x4, offset = 0x4, fixed_abs, tag = 'smem constant byte address 0x4 - core index']
  #allocation1 [shape = 'u32[144,128]{1,0:T(1,128)}', space=vmem, size = 0x12000, scoped, tag = 'internal scratch']
  %s0 = inlined_call_operand.hbm [shape: f32[128,128], index: 0, kind: input, shape index: {}]
  %s1 = inlined_call_operand.hbm [shape: f32[128,128], index: 1, kind: input, shape index: {}]
  %s2 = inlined_call_operand.vmem [shape: f32[1,128], index: 2, kind: input, shape index: {}]
  %s3 = inlined_call_operand.vmem [shape: f32[1,128], index: 3, kind: input, shape index: {}]
  %s4 = inlined_call_operand.hbm [shape: f32[128,128], index: 4, kind: output, shape index: {}]
  %s5 = sld [smem:[#allocation0]]
  $region34: #{tpu_custom_call.1} parent=0
    _
  %s7 = ssub.s32 1, %s5
  %s8 = scalar_select 0, %s7, %s5
  $region1: #{tpu_custom_call.1} parent=0
    #allocation2 [shape = 'u8[65536]{0}', space=vmem, size = 0x10000, scoped, tag = 'input window, operand 0, single buffered']
    #allocation3 [shape = 's32[1]{0}', space=sflag, size = 0x4, scoped, tag = 'scoped memory for tpu_custom_call.1']
    #allocation4 [shape = 's32[1]{0}', space=sflag, size = 0x4, scoped, tag = 'scoped memory for tpu_custom_call.1']
    #allocation5 [shape = 'u8[65536]{0}', space=vmem, size = 0x10000, scoped, tag = 'input window, operand 1, single buffered']
    #allocation6 [shape = 's32[1]{0}', space=sflag, size = 0x4, scoped, tag = 'scoped memory for tpu_custom_call.1']
    #allocation7 [shape = 'u8[65536]{0}', space=vmem, size = 0x10000, scoped, tag = 'output window, operand 0, single buffered']
    %9 = vsyncpa [#allocation3], 0
    %10 = vsyncpa [#allocation6], 0
    %11 = vsyncpa [#allocation4], 0
    // Predicated region
    $region2: #{tpu_custom_call.1} parent=1 // pred_check
      _
    $region3: #{tpu_custom_call.1} parent=1 // pred_check_branch
      %13 = sbr.rel (0) target = $region5
    $region4: #{tpu_custom_call.1} parent=1 // pred_region
      %s15 = ssub.s32 2048, 2048
      %16 = vsyncadd [#allocation3], %s15
      %s17 = sshll.u32 [#allocation2], 4
      %s18 = int_to_ptr.vmem [resolvable:$true] %s17
      %23 = dma.hbm_to_vmem [thread:$0]  %s0, 2048, %s18, [#allocation3], 128, 128, 8
    $region5: #{tpu_custom_call.1} parent=1 // pred_fallthru
      _
    // Predicated region
    $region6: #{tpu_custom_call.1} parent=1 // pred_check
      _
    $region7: #{tpu_custom_call.1} parent=1 // pred_check_branch
      %25 = sbr.rel (0) target = $region9
    $region8: #{tpu_custom_call.1} parent=1 // pred_region
      %s27 = ssub.s32 2048, 2048
      %28 = vsyncadd [#allocation6], %s27
      %s29 = sshll.u32 [#allocation5], 4
      %s30 = int_to_ptr.vmem [resolvable:$true] %s29
      %35 = dma.hbm_to_vmem [thread:$0]  %s1, 2048, %s30, [#allocation6], 128, 128, 8
    $region9: #{tpu_custom_call.1} parent=1 // pred_fallthru
      _
    // Predicated region
    $region10: #{tpu_custom_call.1} parent=1 // pred_check
      _
    $region11: #{tpu_custom_call.1} parent=1 // pred_check_branch
      %37 = sbr.rel (0) target = $region13
    $region12: #{tpu_custom_call.1} parent=1 // pred_region
      _
    $region13: #{tpu_custom_call.1} parent=1 // pred_fallthru
      _
    // Predicated region
    $region14: #{tpu_custom_call.1} parent=1 // pred_check
      _
    $region15: #{tpu_custom_call.1} parent=1 // pred_check_branch
      %39 = sbr.rel (0) target = $region17
    $region16: #{tpu_custom_call.1} parent=1 // pred_region
      _
    $region17: #{tpu_custom_call.1} parent=1 // pred_fallthru
      _
    // Predicated region
    $region18: #{tpu_custom_call.1} parent=1 // pred_check
      _
    $region19: #{tpu_custom_call.1} parent=1 // pred_check_branch
      %41 = sbr.rel (0) target = $region21
    $region20: #{tpu_custom_call.1} parent=1 // pred_region
      %42 = dma.done [#allocation3], 2048
    $region21: #{tpu_custom_call.1} parent=1 // pred_fallthru
      _
    // Predicated region
    $region22: #{tpu_custom_call.1} parent=1 // pred_check
      _
    $region23: #{tpu_custom_call.1} parent=1 // pred_check_branch
      %44 = sbr.rel (0) target = $region25
    $region24: #{tpu_custom_call.1} parent=1 // pred_region
      %45 = dma.done [#allocation6], 2048
    $region25: #{tpu_custom_call.1} parent=1 // pred_fallthru
      _
    %v46 = vld [vmem:[#allocation2] sm:$0xff]
    %v47 = vld [vmem:[#allocation2 + $0x8] sm:$0xff]
    %v48 = vld [vmem:[#allocation2 + $0x10] sm:$0xff]
    %v49 = vld [vmem:[#allocation2 + $0x18] sm:$0xff]
    %v50 = vld [vmem:[#allocation2 + $0x20] sm:$0xff]
    %v51 = vld [vmem:[#allocation2 + $0x28] sm:$0xff]
    %v52 = vld [vmem:[#allocation2 + $0x30] sm:$0xff]
    %v53 = vld [vmem:[#allocation2 + $0x38] sm:$0xff]
    %v54 = vld [vmem:[#allocation2 + $0x40] sm:$0xff]
    %v55 = vld [vmem:[#allocation2 + $0x48] sm:$0xff]
    %v56 = vld [vmem:[#allocation2 + $0x50] sm:$0xff]
    %v57 = vld [vmem:[#allocation2 + $0x58] sm:$0xff]
    %v58 = vld [vmem:[#allocation2 + $0x60] sm:$0xff]
    %v59 = vld [vmem:[#allocation2 + $0x68] sm:$0xff]
    %v60 = vld [vmem:[#allocation2 + $0x70] sm:$0xff]
    %v61 = vld [vmem:[#allocation2 + $0x78] sm:$0xff]
    %v62 = vld [vmem:[#allocation5] sm:$0xff]
    %v63 = vld [vmem:[#allocation5 + $0x8] sm:$0xff]
    %v64 = vld [vmem:[#allocation5 + $0x10] sm:$0xff]
    %v65 = vld [vmem:[#allocation5 + $0x18] sm:$0xff]
    %v66 = vld [vmem:[#allocation5 + $0x20] sm:$0xff]
    %v67 = vld [vmem:[#allocation5 + $0x28] sm:$0xff]
    %v68 = vld [vmem:[#allocation5 + $0x30] sm:$0xff]
    %v69 = vld [vmem:[#allocation5 + $0x38] sm:$0xff]
    %v70 = vld [vmem:[#allocation5 + $0x40] sm:$0xff]
    %v71 = vld [vmem:[#allocation5 + $0x48] sm:$0xff]
    %v72 = vld [vmem:[#allocation5 + $0x50] sm:$0xff]
    %v73 = vld [vmem:[#allocation5 + $0x58] sm:$0xff]
    %v74 = vld [vmem:[#allocation5 + $0x60] sm:$0xff]
    %v75 = vld [vmem:[#allocation5 + $0x68] sm:$0xff]
    %v76 = vld [vmem:[#allocation5 + $0x70] sm:$0xff]
    %v77 = vld [vmem:[#allocation5 + $0x78] sm:$0xff]
    %78 = vmatprep.subr.mxu0 0.0
    %79 = vmatpush1.msra.mxu0 %v62
    %80 = vmatprep.subr.mxu0 0.0
    %81 = vmatpush1.msra.mxu0 %v63
    %82 = vmatprep.subr.mxu0 0.0
    %83 = vmatpush1.msra.mxu0 %v64
    %84 = vmatprep.subr.mxu0 0.0
    %85 = vmatpush1.msra.mxu0 %v65
    %86 = vmatprep.subr.mxu0 0.0
    %87 = vmatpush1.msra.mxu0 %v66
    %88 = vmatprep.subr.mxu0 0.0
    %89 = vmatpush1.msra.mxu0 %v67
    %90 = vmatprep.subr.mxu0 0.0
    %91 = vmatpush1.msra.mxu0 %v68
    %92 = vmatprep.subr.mxu0 0.0
    %93 = vmatpush1.msra.mxu0 %v69
    %94 = vmatprep.subr.mxu0 0.0
    %95 = vmatpush1.msra.mxu0 %v70
    %96 = vmatprep.subr.mxu0 0.0
    %97 = vmatpush1.msra.mxu0 %v71
    %98 = vmatprep.subr.mxu0 0.0
    %99 = vmatpush1.msra.mxu0 %v72
    %100 = vmatprep.subr.mxu0 0.0
    %101 = vmatpush1.msra.mxu0 %v73
    %102 = vmatprep.subr.mxu0 0.0
    %103 = vmatpush1.msra.mxu0 %v74
    %104 = vmatprep.subr.mxu0 0.0
    %105 = vmatpush1.msra.mxu0 %v75
    %106 = vmatprep.subr.mxu0 0.0
    %107 = vmatpush1.msra.mxu0 %v76
    %108 = vmatprep.subr.mxu0 0.0
    %109 = vmatpush1.msra.mxu0 %v77
    %110 = vmatprep.subr.mxu0 0.0
    %111 = vmatpush1.msra.mxu0 0.0
    %112 = vmatprep.subr.mxu0 0.0
    %113 = vmatpush1.msra.mxu0 0.0
    %114 = vmatprep.subr.mxu0 0.0
    %115 = vmatpush1.msra.mxu0 0.0
    %116 = vmatprep.subr.mxu0 0.0
    %117 = vmatpush1.msra.mxu0 0.0
    %118 = vmatprep.subr.mxu0 0.0
    %119 = vmatpush1.msra.mxu0 0.0
    %120 = vmatprep.subr.mxu0 0.0
    %121 = vmatpush1.msra.mxu0 0.0
    %122 = vmatprep.subr.mxu0 0.0
    %123 = vmatpush1.msra.mxu0 0.0
    %124 = vmatprep.subr.mxu0 0.0
    %125 = vmatpush1.msra.mxu0 0.0
    %126 = vmatprep.subr.mxu0 0.0
    %127 = vmatpush1.msra.mxu0 0.0
    %128 = vmatprep.subr.mxu0 0.0
    %129 = vmatpush1.msra.mxu0 0.0
    %130 = vmatprep.subr.mxu0 0.0
    %131 = vmatpush1.msra.mxu0 0.0
    %132 = vmatprep.subr.mxu0 0.0
    %133 = vmatpush1.msra.mxu0 0.0
    %134 = vmatprep.subr.mxu0 0.0
    %135 = vmatpush1.msra.mxu0 0.0
    %136 = vmatprep.subr.mxu0 0.0
    %137 = vmatpush1.msra.mxu0 0.0
    %138 = vmatprep.subr.mxu0 0.0
    %139 = vmatpush1.msra.mxu0 0.0
    %140 = vmatprep.subr.mxu0 0.0
    %141 = vmatpush1.msra.mxu0 0.0
    %142 = vmatprep.mubr.f32.mxu0 0.0
    %143 = vmatmul.mubr.f32.gmra.mrb[0].mxu0 %v46
    %v144 = vpop.f32.mrb[0].mxu0
    %v145 = vadd.f32 0.0, %v144
    %v146 = vpop.f32.mrb[0].mxu0
    %147 = vmatprep.mubr.f32.mxu0 0.0
    %148 = vmatmul.mubr.f32.gmra.mrb[0].mxu0 %v47
    %v149 = vpop.f32.mrb[0].mxu0
    %v150 = vadd.f32 0.0, %v149
    %v151 = vpop.f32.mrb[0].mxu0
    %152 = vmatprep.mubr.f32.mxu0 0.0
    %153 = vmatmul.mubr.f32.gmra.mrb[0].mxu0 %v48
    %v154 = vpop.f32.mrb[0].mxu0
    %v155 = vadd.f32 0.0, %v154
    %v156 = vpop.f32.mrb[0].mxu0
    %157 = vmatprep.mubr.f32.mxu0 0.0
    %158 = vmatmul.mubr.f32.gmra.mrb[0].mxu0 %v49
    %v159 = vpop.f32.mrb[0].mxu0
    %v160 = vadd.f32 0.0, %v159
    %v161 = vpop.f32.mrb[0].mxu0
    %162 = vmatprep.mubr.f32.mxu0 0.0
    %163 = vmatmul.mubr.f32.gmra.mrb[0].mxu0 %v50
    %v164 = vpop.f32.mrb[0].mxu0
    %v165 = vadd.f32 0.0, %v164
    %v166 = vpop.f32.mrb[0].mxu0
    %167 = vmatprep.mubr.f32.mxu0 0.0
    %168 = vmatmul.mubr.f32.gmra.mrb[0].mxu0 %v51
    %v169 = vpop.f32.mrb[0].mxu0
    %v170 = vadd.f32 0.0, %v169
    %v171 = vpop.f32.mrb[0].mxu0
    %172 = vmatprep.mubr.f32.mxu0 0.0
    %173 = vmatmul.mubr.f32.gmra.mrb[0].mxu0 %v52
    %v174 = vpop.f32.mrb[0].mxu0
    %v175 = vadd.f32 0.0, %v174
    %v176 = vpop.f32.mrb[0].mxu0
    %177 = vmatprep.mubr.f32.mxu0 0.0
    %178 = vmatmul.mubr.f32.gmra.mrb[0].mxu0 %v53
    %v179 = vpop.f32.mrb[0].mxu0
    %v180 = vadd.f32 0.0, %v179
    %v181 = vpop.f32.mrb[0].mxu0
    %182 = vmatprep.mubr.f32.mxu0 0.0
    %183 = vmatmul.mubr.f32.gmra.mrb[0].mxu0 %v54
    %v184 = vpop.f32.mrb[0].mxu0
    %v185 = vadd.f32 0.0, %v184
    %v186 = vpop.f32.mrb[0].mxu0
    %187 = vmatprep.mubr.f32.mxu0 0.0
    %188 = vmatmul.mubr.f32.gmra.mrb[0].mxu0 %v55
    %v189 = vpop.f32.mrb[0].mxu0
    %v190 = vadd.f32 0.0, %v189
    %v191 = vpop.f32.mrb[0].mxu0
    %192 = vmatprep.mubr.f32.mxu0 0.0
    %193 = vmatmul.mubr.f32.gmra.mrb[0].mxu0 %v56
    %v194 = vpop.f32.mrb[0].mxu0
    %v195 = vadd.f32 0.0, %v194
    %v196 = vpop.f32.mrb[0].mxu0
    %197 = vmatprep.mubr.f32.mxu0 0.0
    %198 = vmatmul.mubr.f32.gmra.mrb[0].mxu0 %v57
    %v199 = vpop.f32.mrb[0].mxu0
    %v200 = vadd.f32 0.0, %v199
    %v201 = vpop.f32.mrb[0].mxu0
    %202 = vmatprep.mubr.f32.mxu0 0.0
    %203 = vmatmul.mubr.f32.gmra.mrb[0].mxu0 %v58
    %v204 = vpop.f32.mrb[0].mxu0
    %v205 = vadd.f32 0.0, %v204
    %v206 = vpop.f32.mrb[0].mxu0
    %207 = vmatprep.mubr.f32.mxu0 0.0
    %208 = vmatmul.mubr.f32.gmra.mrb[0].mxu0 %v59
    %v209 = vpop.f32.mrb[0].mxu0
    %v210 = vadd.f32 0.0, %v209
    %v211 = vpop.f32.mrb[0].mxu0
    %212 = vmatprep.mubr.f32.mxu0 0.0
    %213 = vmatmul.mubr.f32.gmra.mrb[0].mxu0 %v60
    %v214 = vpop.f32.mrb[0].mxu0
    %v215 = vadd.f32 0.0, %v214
    %v216 = vpop.f32.mrb[0].mxu0
    %217 = vmatprep.mubr.f32.mxu0 0.0
    %218 = vmatmul.mubr.f32.gmra.mrb[0].mxu0 %v61
    %v219 = vpop.f32.mrb[0].mxu0
    %v220 = vadd.f32 0.0, %v219
    %v221 = vpop.f32.mrb[0].mxu0
    %222 = vdwg.mxu0
    %v223 = vld [vmem:[%s2] sm:$0x1]
    %v225 = vlaneseq
    %v226 = vshrl.u32 %v225, 7
    %v227 = vsub.s32 0, %v226
    %v228 = vrot.slane %v223, %v227
    %v230 = vmul.f32 %v145, %v228
    %v231 = vmul.f32 %v150, %v228
    %v232 = vmul.f32 %v155, %v228
    %v233 = vmul.f32 %v160, %v228
    %v234 = vmul.f32 %v165, %v228
    %v235 = vmul.f32 %v170, %v228
    %v236 = vmul.f32 %v175, %v228
    %v237 = vmul.f32 %v180, %v228
    %v238 = vmul.f32 %v185, %v228
    %v239 = vmul.f32 %v190, %v228
    %v240 = vmul.f32 %v195, %v228
    %v241 = vmul.f32 %v200, %v228
    %v242 = vmul.f32 %v205, %v228
    %v243 = vmul.f32 %v210, %v228
    %v244 = vmul.f32 %v215, %v228
    %v245 = vmul.f32 %v220, %v228
    %v246 = vld [vmem:[%s3] sm:$0x1]
    %v248 = vlaneseq
    %v249 = vshrl.u32 %v248, 7
    %v250 = vsub.s32 0, %v249
    %v251 = vrot.slane %v246, %v250
    %v253 = vadd.f32 %v230, %v251
    %v254 = vadd.f32 %v231, %v251
    %v255 = vadd.f32 %v232, %v251
    %v256 = vadd.f32 %v233, %v251
    %v257 = vadd.f32 %v234, %v251
    %v258 = vadd.f32 %v235, %v251
    %v259 = vadd.f32 %v236, %v251
    %v260 = vadd.f32 %v237, %v251
    %v261 = vadd.f32 %v238, %v251
    %v262 = vadd.f32 %v239, %v251
    %v263 = vadd.f32 %v240, %v251
    %v264 = vadd.f32 %v241, %v251
    %v265 = vadd.f32 %v242, %v251
    %v266 = vadd.f32 %v243, %v251
    %v267 = vadd.f32 %v244, %v251
    %v268 = vadd.f32 %v245, %v251
    %v269 = vmax.f32 %v253, 0.0
    %v270 = vmax.f32 %v254, 0.0
    %v271 = vmax.f32 %v255, 0.0
    %v272 = vmax.f32 %v256, 0.0
    %v273 = vmax.f32 %v257, 0.0
    %v274 = vmax.f32 %v258, 0.0
    %v275 = vmax.f32 %v259, 0.0
    %v276 = vmax.f32 %v260, 0.0
    %v277 = vmax.f32 %v261, 0.0
    %v278 = vmax.f32 %v262, 0.0
    %v279 = vmax.f32 %v263, 0.0
    %v280 = vmax.f32 %v264, 0.0
    %v281 = vmax.f32 %v265, 0.0
    %v282 = vmax.f32 %v266, 0.0
    %v283 = vmax.f32 %v267, 0.0
    %v284 = vmax.f32 %v268, 0.0
    %285 = vst [vmem:[#allocation7] sm:$0xff] %v269
    %286 = vst [vmem:[#allocation7 + $0x8] sm:$0xff] %v270
    %287 = vst [vmem:[#allocation7 + $0x10] sm:$0xff] %v271
    %288 = vst [vmem:[#allocation7 + $0x18] sm:$0xff] %v272
    %289 = vst [vmem:[#allocation7 + $0x20] sm:$0xff] %v273
    %290 = vst [vmem:[#allocation7 + $0x28] sm:$0xff] %v274
    %291 = vst [vmem:[#allocation7 + $0x30] sm:$0xff] %v275
    %292 = vst [vmem:[#allocation7 + $0x38] sm:$0xff] %v276
    %293 = vst [vmem:[#allocation7 + $0x40] sm:$0xff] %v277
    %294 = vst [vmem:[#allocation7 + $0x48] sm:$0xff] %v278
    %295 = vst [vmem:[#allocation7 + $0x50] sm:$0xff] %v279
    %296 = vst [vmem:[#allocation7 + $0x58] sm:$0xff] %v280
    %297 = vst [vmem:[#allocation7 + $0x60] sm:$0xff] %v281
    %298 = vst [vmem:[#allocation7 + $0x68] sm:$0xff] %v282
    %299 = vst [vmem:[#allocation7 + $0x70] sm:$0xff] %v283
    %300 = vst [vmem:[#allocation7 + $0x78] sm:$0xff] %v284
    // Predicated region
    $region26: #{tpu_custom_call.1} parent=1 // pred_check
      _
    $region27: #{tpu_custom_call.1} parent=1 // pred_check_branch
      %302 = sbr.rel (0) target = $region29
    $region28: #{tpu_custom_call.1} parent=1 // pred_region
      %s304 = ssub.s32 2048, 2048
      %305 = vsyncadd [#allocation4], %s304
      %s306 = sshll.u32 [#allocation7], 4
      %s307 = int_to_ptr.vmem [resolvable:$true] %s306
      %312 = dma.vmem_to_hbm [thread:$0]  %s307, 2048, %s4, [#allocation4], 128, 128, 8
    $region29: #{tpu_custom_call.1} parent=1 // pred_fallthru
      _
    // Predicated region
    $region30: #{tpu_custom_call.1} parent=1 // pred_check
      _
    $region31: #{tpu_custom_call.1} parent=1 // pred_check_branch
      %314 = sbr.rel (0) target = $region33
    $region32: #{tpu_custom_call.1} parent=1 // pred_region
      %315 = dma.done [#allocation4], 2048
    $region33: #{tpu_custom_call.1} parent=1 // pred_fallthru
      _
    %316 = vsyncpa [#allocation3], 1
    %317 = vsyncpa [#allocation6], 1
    %318 = vsyncpa [#allocation4], 1

</llo_original>
